<compile_context>
chip_gen: v7x
topology: tpu7x:2x2x1
jax: 0.10.0
libtpu: 0.0.40
codegen_flags: <defaults>
</compile_context>

<pallas_src>
import functools

import jax
import jax.numpy as jnp
from jax import lax
from jax.experimental import pallas as pl
from jax.experimental.pallas import tpu as pltpu

_LANES = 128
_MAX_BLOCK_ROWS = 2048  # (2048, 128) f32 block = 1 MiB -> ~85% of HBM roofline


def _sublane_multiple(dtype) -> int:
    # f32 -> 8, bf16/f16 -> 16 (sub-32-bit packs along sublanes)
    return {4: 8, 2: 16, 1: 32}[dtype.itemsize]


def _iou_kernel(x_ref, y_ref, ixn_ref, uxn_ref, *,
                block_rows, total_rows, blocks_per_slice, min_logit, thresh):
    p = pl.program_id(0)   # parallel slice (TensorCore split on v7x)
    k = pl.program_id(1)   # reduction over row-blocks of this slice

    @pl.when(k == 0)
    def _():
        ixn_ref[...] = jnp.zeros_like(ixn_ref)
        uxn_ref[...] = jnp.zeros_like(uxn_ref)

    x = x_ref[...]
    y = y_ref[...]
    xm = x >= jnp.asarray(min_logit, x.dtype)
    ym = y >= jnp.asarray(thresh, y.dtype)
    ixn = jnp.logical_and(xm, ym)
    uxn = jnp.logical_or(xm, ym)

    blk = p * blocks_per_slice + k
    # May be <= 0 for clamped (fully out-of-range) blocks -> everything masked.
    rows_left = total_rows - blk * block_rows

    @pl.when(rows_left >= block_rows)
    def _():
        # Fast path: full block, no masking work.
        ixn_ref[...] += jnp.sum(
            ixn.astype(jnp.int32), axis=0, keepdims=True).reshape(1, 1, _LANES)
        uxn_ref[...] += jnp.sum(
            uxn.astype(jnp.int32), axis=0, keepdims=True).reshape(1, 1, _LANES)

    @pl.when(rows_left < block_rows)
    def _():
        # Ragged / out-of-range block: mask rows past the end of the array.
        valid = lax.broadcasted_iota(jnp.int32, ixn.shape, 0) < rows_left
        ixn_ref[...] += jnp.sum(
            jnp.logical_and(ixn, valid).astype(jnp.int32),
            axis=0, keepdims=True).reshape(1, 1, _LANES)
        uxn_ref[...] += jnp.sum(
            jnp.logical_and(uxn, valid).astype(jnp.int32),
            axis=0, keepdims=True).reshape(1, 1, _LANES)


def iou_pallas(inp, target, min_logit: float = 0.0, eps: float = 1e-06):
    """Pointwise IoU metric. Returns a scalar float32."""

    def _prep(a):
        a = jnp.asarray(a)
        # Compare in native float dtype (no HBM-doubling upcast for bf16/f16);
        # anything non-float (bool/int) is cast once to f32.
        if a.dtype.name not in ("float32", "bfloat16", "float16"):
            a = a.astype(jnp.float32)
        return a.reshape(-1)

    x = _prep(inp)
    y = _prep(target)
    n = int(x.shape[0])
    assert int(y.shape[0]) == n, "input/target must have the same element count"

    sm = max(_sublane_multiple(x.dtype), _sublane_multiple(y.dtype))
    chunk = sm * _LANES
    n_pad = pl.cdiv(n, chunk) * chunk
    if n_pad != n:
        # Tiny tail pad only (< one sublane chunk). -inf is strictly "negative"
        # in both masks for every float dtype, so padding never counts.
        x = jnp.pad(x, (0, n_pad - n), constant_values=float("-inf"))
        y = jnp.pad(y, (0, n_pad - n), constant_values=float("-inf"))

    rows = n_pad // _LANES
    x2 = x.reshape(rows, _LANES)
    y2 = y.reshape(rows, _LANES)

    block_rows = min(_MAX_BLOCK_ROWS, rows)          # multiple of sm by construction
    num_blocks = pl.cdiv(rows, block_rows)
    n_slices = min(2, num_blocks)                    # both TensorCores on v7x
    blocks_per_slice = pl.cdiv(num_blocks, n_slices)

    def in_map(p, k):
        # Clamp fully out-of-range blocks (masked to zero inside the kernel).
        blk = jnp.minimum(p * blocks_per_slice + k, num_blocks - 1)
        return (blk, 0)

    kernel = functools.partial(
        _iou_kernel,
        block_rows=block_rows,
        total_rows=rows,
        blocks_per_slice=blocks_per_slice,
        min_logit=float(min_logit),
        thresh=float(0.5 + eps),
    )

    ixn_parts, uxn_parts = pl.pallas_call(
        kernel,
        out_shape=(
            jax.ShapeDtypeStruct((n_slices, 1, _LANES), jnp.int32),
            jax.ShapeDtypeStruct((n_slices, 1, _LANES), jnp.int32),
        ),
        grid_spec=pltpu.PrefetchScalarGridSpec(
            num_scalar_prefetch=0,
            grid=(n_slices, blocks_per_slice),
            in_specs=[
                pl.BlockSpec((block_rows, _LANES), in_map),
                pl.BlockSpec((block_rows, _LANES), in_map),
            ],
            out_specs=[
                pl.BlockSpec((1, 1, _LANES), lambda p, k: (p, 0, 0)),
                pl.BlockSpec((1, 1, _LANES), lambda p, k: (p, 0, 0)),
            ],
        ),
        compiler_params=pltpu.CompilerParams(
            dimension_semantics=("parallel", "arbitrary")),
    )(x2, y2)

    # Final tiny cross-lane/cross-slice reduce + float divide in JAX.
    ixn = jnp.sum(ixn_parts).astype(jnp.float32)
    uxn = jnp.sum(uxn_parts).astype(jnp.float32)
    # Float division: union == 0 -> inf/nan, same as torch.div(int, int).
    return ixn / uxn


def iou_reference(inp, target, min_logit: float = 0.0, eps: float = 1e-06):
    x = inp >= min_logit
    y = target >= 0.5 + eps
    ixn = jnp.count_nonzero(jnp.logical_and(x, y)).astype(jnp.float32)
    uxn = jnp.count_nonzero(jnp.logical_or(x, y)).astype(jnp.float32)
    return ixn / uxn


if __name__ == "__main__":
    key = jax.random.PRNGKey(0)
    k1, k2 = jax.random.split(key)

    # Primary small test, consistent with the module's forward (NCHW logits).
    shape = (2, 4, 16, 16)
    inp = jax.random.normal(k1, shape, dtype=jnp.float32)               # logits
    target = (jax.random.uniform(k2, shape) > 0.5).astype(jnp.float32)  # binary

    result = iou_pallas(inp, target)
    jax.block_until_ready(result)

    ref = iou_reference(inp, target)
    assert jnp.allclose(result, ref, rtol=1e-6, atol=1e-6), (result, ref)

    # Secondary check: element count not a multiple of 128 (tiny -inf tail pad).
    k3, k4 = jax.random.split(k2)
    shape2 = (3, 5, 9, 7)  # 945 elements
    inp2 = jax.random.normal(k3, shape2, dtype=jnp.float32)
    target2 = (jax.random.uniform(k4, shape2) > 0.5).astype(jnp.float32)
    r2 = iou_pallas(inp2, target2)
    jax.block_until_ready(r2)
    assert jnp.allclose(r2, iou_reference(inp2, target2), rtol=1e-6, atol=1e-6)

    # Secondary check: multi-block + dual-slice + ragged last block path.
    k5, k6 = jax.random.split(k4)
    shape3 = (2, 5, 192, 180)  # 345600 elements -> 2 row-blocks, 2 slices
    inp3 = jax.random.normal(k5, shape3, dtype=jnp.float32)
    target3 = (jax.random.uniform(k6, shape3) > 0.5).astype(jnp.float32)
    r3 = iou_pallas(inp3, target3)
    jax.block_until_ready(r3)
    assert jnp.allclose(r3, iou_reference(inp3, target3), rtol=1e-6, atol=1e-6)

    print("KERNEL_OK")
</pallas_src>

<mosaic_0001>
module attributes {stable_mosaic.version = 11 : i64} {
  func.func @_iou_kernel(%arg0: i32, %arg1: i32, %arg2: memref<16x128xf32, #tpu.memory_space<vmem>>, %arg3: memref<16x128xf32, #tpu.memory_space<vmem>>, %arg4: memref<1x1x128xi32, #tpu.memory_space<vmem>>, %arg5: memref<1x1x128xi32, #tpu.memory_space<vmem>>) attributes {dimension_semantics = [#tpu.dimension_semantics<parallel>, #tpu.dimension_semantics<arbitrary>], iteration_bounds = array<i64: 1, 1>, scalar_prefetch = 0 : i64, scratch_operands = 0 : i64, tpu.core_type = #tpu.core_type<tc>, window_params = [{transform_indices = @transform_0, window_bounds = array<i64: 16, 128>}, {transform_indices = @transform_1, window_bounds = array<i64: 16, 128>}, {transform_indices = @transform_2, window_bounds = array<i64: 1, 1, 128>}, {transform_indices = @transform_3, window_bounds = array<i64: 1, 1, 128>}]} {
    %c0_i32 = arith.constant 0 : i32
    %0 = arith.cmpi eq, %arg1, %c0_i32 : i32
    %1 = arith.extui %0 : i1 to i32
    %c0_i32_0 = arith.constant 0 : i32
    %2 = arith.cmpi ne, %1, %c0_i32_0 : i32
    scf.if %2 {
      %c0_i32_10 = arith.constant 0 : i32
      %21 = vector.broadcast %c0_i32_10 : i32 to vector<1x1x128xi32>
      %c0_11 = arith.constant 0 : index
      %c0_12 = arith.constant 0 : index
      %c0_13 = arith.constant 0 : index
      %22 = vector.load %arg4[%c0_11, %c0_12, %c0_13] : memref<1x1x128xi32, #tpu.memory_space<vmem>>, vector<1x1x128xi32>
      tpu.vector_store %arg4[%c0_11, %c0_12, %c0_13], %21 {strides = array<i32>} : memref<1x1x128xi32, #tpu.memory_space<vmem>>, vector<1x1x128xi32>,
      %c0_i32_14 = arith.constant 0 : i32
      %23 = vector.broadcast %c0_i32_14 : i32 to vector<1x1x128xi32>
      %c0_15 = arith.constant 0 : index
      %c0_16 = arith.constant 0 : index
      %c0_17 = arith.constant 0 : index
      %24 = vector.load %arg5[%c0_15, %c0_16, %c0_17] : memref<1x1x128xi32, #tpu.memory_space<vmem>>, vector<1x1x128xi32>
      tpu.vector_store %arg5[%c0_15, %c0_16, %c0_17], %23 {strides = array<i32>} : memref<1x1x128xi32, #tpu.memory_space<vmem>>, vector<1x1x128xi32>,
    } else {
    }
    %c0 = arith.constant 0 : index
    %c0_1 = arith.constant 0 : index
    %3 = vector.load %arg2[%c0, %c0_1] : memref<16x128xf32, #tpu.memory_space<vmem>>, vector<16x128xf32>
    %c0_2 = arith.constant 0 : index
    %c0_3 = arith.constant 0 : index
    %4 = vector.load %arg3[%c0_2, %c0_3] : memref<16x128xf32, #tpu.memory_space<vmem>>, vector<16x128xf32>
    %cst = arith.constant 0.000000e+00 : f32
    %5 = vector.broadcast %cst : f32 to vector<16x128xf32>
    %6 = arith.cmpf oge, %3, %5 : vector<16x128xf32>
    %cst_4 = arith.constant 5.000010e-01 : f32
    %7 = vector.broadcast %cst_4 : f32 to vector<16x128xf32>
    %8 = arith.cmpf oge, %4, %7 : vector<16x128xf32>
    %9 = arith.andi %6, %8 : vector<16x128xi1>
    %10 = arith.ori %6, %8 : vector<16x128xi1>
    %c1_i32 = arith.constant 1 : i32
    %11 = arith.muli %arg0, %c1_i32 : i32
    %12 = arith.addi %11, %arg1 : i32
    %c16_i32 = arith.constant 16 : i32
    %13 = arith.muli %12, %c16_i32 : i32
    %c16_i32_5 = arith.constant 16 : i32
    %14 = arith.subi %c16_i32_5, %13 : i32
    %c16_i32_6 = arith.constant 16 : i32
    %15 = arith.cmpi sge, %14, %c16_i32_6 : i32
    %16 = arith.extui %15 : i1 to i32
    %c0_i32_7 = arith.constant 0 : i32
    %17 = arith.cmpi ne, %16, %c0_i32_7 : i32
    scf.if %17 {
      %c0_10 = arith.constant 0 : index
      %c0_11 = arith.constant 0 : index
      %c0_12 = arith.constant 0 : index
      %21 = vector.load %arg4[%c0_10, %c0_11, %c0_12] : memref<1x1x128xi32, #tpu.memory_space<vmem>>, vector<1x1x128xi32>
      %22 = arith.extui %9 : vector<16x128xi1> to vector<16x128xi32>
      %cst_13 = arith.constant dense<0> : vector<128xi32>
      %23 = vector.multi_reduction <add>, %22, %cst_13 [0] : vector<16x128xi32> to vector<128xi32>
      %24 = vector.shape_cast %23 : vector<128xi32> to vector<1x128xi32>
      %25 = vector.shape_cast %24 : vector<1x128xi32> to vector<1x1x128xi32>
      %26 = arith.addi %21, %25 : vector<1x1x128xi32>
      %c0_14 = arith.constant 0 : index
      %c0_15 = arith.constant 0 : index
      %c0_16 = arith.constant 0 : index
      %27 = vector.load %arg4[%c0_14, %c0_15, %c0_16] : memref<1x1x128xi32, #tpu.memory_space<vmem>>, vector<1x1x128xi32>
      tpu.vector_store %arg4[%c0_14, %c0_15, %c0_16], %26 {strides = array<i32>} : memref<1x1x128xi32, #tpu.memory_space<vmem>>, vector<1x1x128xi32>,
      %c0_17 = arith.constant 0 : index
      %c0_18 = arith.constant 0 : index
      %c0_19 = arith.constant 0 : index
      %28 = vector.load %arg5[%c0_17, %c0_18, %c0_19] : memref<1x1x128xi32, #tpu.memory_space<vmem>>, vector<1x1x128xi32>
      %29 = arith.extui %10 : vector<16x128xi1> to vector<16x128xi32>
      %cst_20 = arith.constant dense<0> : vector<128xi32>
      %30 = vector.multi_reduction <add>, %29, %cst_20 [0] : vector<16x128xi32> to vector<128xi32>
      %31 = vector.shape_cast %30 : vector<128xi32> to vector<1x128xi32>
      %32 = vector.shape_cast %31 : vector<1x128xi32> to vector<1x1x128xi32>
      %33 = arith.addi %28, %32 : vector<1x1x128xi32>
      %c0_21 = arith.constant 0 : index
      %c0_22 = arith.constant 0 : index
      %c0_23 = arith.constant 0 : index
      %34 = vector.load %arg5[%c0_21, %c0_22, %c0_23] : memref<1x1x128xi32, #tpu.memory_space<vmem>>, vector<1x1x128xi32>
      tpu.vector_store %arg5[%c0_21, %c0_22, %c0_23], %33 {strides = array<i32>} : memref<1x1x128xi32, #tpu.memory_space<vmem>>, vector<1x1x128xi32>,
    } else {
    }
    %c16_i32_8 = arith.constant 16 : i32
    %18 = arith.cmpi slt, %14, %c16_i32_8 : i32
    %19 = arith.extui %18 : i1 to i32
    %c0_i32_9 = arith.constant 0 : i32
    %20 = arith.cmpi ne, %19, %c0_i32_9 : i32
    scf.if %20 {
      %21 = tpu.iota {dimensions = array<i32: 0>} : vector<16x128xi32>
      %22 = vector.broadcast %14 : i32 to vector<16x128xi32>
      %23 = arith.cmpi slt, %21, %22 : vector<16x128xi32>
      %c0_10 = arith.constant 0 : index
      %c0_11 = arith.constant 0 : index
      %c0_12 = arith.constant 0 : index
      %24 = vector.load %arg4[%c0_10, %c0_11, %c0_12] : memref<1x1x128xi32, #tpu.memory_space<vmem>>, vector<1x1x128xi32>
      %25 = arith.andi %9, %23 : vector<16x128xi1>
      %26 = arith.extui %25 : vector<16x128xi1> to vector<16x128xi32>
      %cst_13 = arith.constant dense<0> : vector<128xi32>
      %27 = vector.multi_reduction <add>, %26, %cst_13 [0] : vector<16x128xi32> to vector<128xi32>
      %28 = vector.shape_cast %27 : vector<128xi32> to vector<1x128xi32>
      %29 = vector.shape_cast %28 : vector<1x128xi32> to vector<1x1x128xi32>
      %30 = arith.addi %24, %29 : vector<1x1x128xi32>
      %c0_14 = arith.constant 0 : index
      %c0_15 = arith.constant 0 : index
      %c0_16 = arith.constant 0 : index
      %31 = vector.load %arg4[%c0_14, %c0_15, %c0_16] : memref<1x1x128xi32, #tpu.memory_space<vmem>>, vector<1x1x128xi32>
      tpu.vector_store %arg4[%c0_14, %c0_15, %c0_16], %30 {strides = array<i32>} : memref<1x1x128xi32, #tpu.memory_space<vmem>>, vector<1x1x128xi32>,
      %c0_17 = arith.constant 0 : index
      %c0_18 = arith.constant 0 : index
      %c0_19 = arith.constant 0 : index
      %32 = vector.load %arg5[%c0_17, %c0_18, %c0_19] : memref<1x1x128xi32, #tpu.memory_space<vmem>>, vector<1x1x128xi32>
      %33 = arith.andi %10, %23 : vector<16x128xi1>
      %34 = arith.extui %33 : vector<16x128xi1> to vector<16x128xi32>
      %cst_20 = arith.constant dense<0> : vector<128xi32>
      %35 = vector.multi_reduction <add>, %34, %cst_20 [0] : vector<16x128xi32> to vector<128xi32>
      %36 = vector.shape_cast %35 : vector<128xi32> to vector<1x128xi32>
      %37 = vector.shape_cast %36 : vector<1x128xi32> to vector<1x1x128xi32>
      %38 = arith.addi %32, %37 : vector<1x1x128xi32>
      %c0_21 = arith.constant 0 : index
      %c0_22 = arith.constant 0 : index
      %c0_23 = arith.constant 0 : index
      %39 = vector.load %arg5[%c0_21, %c0_22, %c0_23] : memref<1x1x128xi32, #tpu.memory_space<vmem>>, vector<1x1x128xi32>
      tpu.vector_store %arg5[%c0_21, %c0_22, %c0_23], %38 {strides = array<i32>} : memref<1x1x128xi32, #tpu.memory_space<vmem>>, vector<1x1x128xi32>,
    } else {
    }
    return
  }
  func.func @transform_0(%arg0: i32, %arg1: i32) -> (i32, i32) {
    %c1_i32 = arith.constant 1 : i32
    %0 = arith.muli %arg0, %c1_i32 : i32
    %1 = arith.addi %0, %arg1 : i32
    %c0_i32 = arith.constant 0 : i32
    %2 = arith.minsi %1, %c0_i32 : i32
    %c0_i32_0 = arith.constant 0 : i32
    %c0_i32_1 = arith.constant 0 : i32
    return %2, %c0_i32_0 : i32, i32
  }
  func.func @transform_1(%arg0: i32, %arg1: i32) -> (i32, i32) {
    %c1_i32 = arith.constant 1 : i32
    %0 = arith.muli %arg0, %c1_i32 : i32
    %1 = arith.addi %0, %arg1 : i32
    %c0_i32 = arith.constant 0 : i32
    %2 = arith.minsi %1, %c0_i32 : i32
    %c0_i32_0 = arith.constant 0 : i32
    %c0_i32_1 = arith.constant 0 : i32
    return %2, %c0_i32_0 : i32, i32
  }
  func.func @transform_2(%arg0: i32, %arg1: i32) -> (i32, i32, i32) {
    %c0_i32 = arith.constant 0 : i32
    %c0_i32_0 = arith.constant 0 : i32
    %c0_i32_1 = arith.constant 0 : i32
    return %arg0, %c0_i32, %c0_i32_0 : i32, i32, i32
  }
  func.func @transform_3(%arg0: i32, %arg1: i32) -> (i32, i32, i32) {
    %c0_i32 = arith.constant 0 : i32
    %c0_i32_0 = arith.constant 0 : i32
    %c0_i32_1 = arith.constant 0 : i32
    return %arg0, %c0_i32, %c0_i32_0 : i32, i32, i32
  }
}

</mosaic_0001>

<llo_original>
// kernel: tpu_custom_call.1
$region0: #{tpu_custom_call.1}
  #allocation0 [shape = 'u32[]', space=smem, size = 0x4, offset = 0x4, fixed_abs, tag = 'smem constant byte address 0x4 - core index']
  #allocation1 [shape = 'u32[144,128]{1,0:T(1,128)}', space=vmem, size = 0x12000, scoped, tag = 'internal scratch']
  %s0 = inlined_call_operand.hbm [shape: f32[16,128], index: 0, kind: input, shape index: {}]
  %s1 = inlined_call_operand.hbm [shape: f32[16,128], index: 1, kind: input, shape index: {}]
  %s2 = inlined_call_operand.hbm [shape: s32[1,1,128], index: 2, kind: output, shape index: {0}]
  %s3 = inlined_call_operand.hbm [shape: s32[1,1,128], index: 3, kind: output, shape index: {1}]
  %4 = xla_tuple %s2, %s3
  %s5 = sld [smem:[#allocation0]]
  $region46: #{tpu_custom_call.1} parent=0
    _
  %s7 = ssub.s32 1, %s5
  %s8 = scalar_select 0, %s7, %s5
  $region1: #{tpu_custom_call.1} parent=0
    #allocation2 [shape = 'u8[8192]{0}', space=vmem, size = 0x2000, scoped, tag = 'input window, operand 0, single buffered']
    #allocation3 [shape = 's32[1]{0}', space=sflag, size = 0x4, scoped, tag = 'scoped memory for tpu_custom_call.1']
    #allocation4 [shape = 's32[1]{0}', space=sflag, size = 0x4, scoped, tag = 'scoped memory for tpu_custom_call.1']
    #allocation5 [shape = 'u8[8192]{0}', space=vmem, size = 0x2000, scoped, tag = 'input window, operand 1, single buffered']
    #allocation6 [shape = 's32[1]{0}', space=sflag, size = 0x4, scoped, tag = 'scoped memory for tpu_custom_call.1']
    #allocation7 [shape = 'u8[512]{0}', space=vmem, size = 0x400, scoped, tag = 'output window, operand 0, single buffered']
    #allocation8 [shape = 'u8[512]{0}', space=vmem, size = 0x400, scoped, tag = 'output window, operand 1, single buffered']
    #allocation9 [shape = 's32[1]{0}', space=sflag, size = 0x4, scoped, tag = 'scoped memory for tpu_custom_call.1']
    %9 = vsyncpa [#allocation3], 0
    %10 = vsyncpa [#allocation6], 0
    %11 = vsyncpa [#allocation4], 0
    %12 = vsyncpa [#allocation9], 0
    // Predicated region
    $region2: #{tpu_custom_call.1} parent=1 // pred_check
      _
    $region3: #{tpu_custom_call.1} parent=1 // pred_check_branch
      %14 = sbr.rel (0) target = $region5
    $region4: #{tpu_custom_call.1} parent=1 // pred_region
      %s15 = sadd.s32 0, 0
      %p16 = scmp.lt.s32.totalorder %s15, 0
      %s17 = scalar_select %p16, %s15, 0
      %s18 = smul.u32 2, %s17
      %s20 = ssub.s32 256, 256
      %21 = vsyncadd [#allocation3], %s20
      %s22 = smul.addr %s18, 128
      %s23 = scalar_lea.hbm %s0, %s22
      %s24 = sshll.u32 [#allocation2], 4
      %s25 = int_to_ptr.vmem [resolvable:$true] %s24
      %30 = dma.hbm_to_vmem [thread:$0]  %s23, 256, %s25, [#allocation3], 128, 128, 8
    $region5: #{tpu_custom_call.1} parent=1 // pred_fallthru
      _
    // Predicated region
    $region6: #{tpu_custom_call.1} parent=1 // pred_check
      _
    $region7: #{tpu_custom_call.1} parent=1 // pred_check_branch
      %32 = sbr.rel (0) target = $region9
    $region8: #{tpu_custom_call.1} parent=1 // pred_region
      %s33 = sadd.s32 0, 0
      %p34 = scmp.lt.s32.totalorder %s33, 0
      %s35 = scalar_select %p34, %s33, 0
      %s36 = smul.u32 2, %s35
      %s38 = ssub.s32 256, 256
      %39 = vsyncadd [#allocation6], %s38
      %s40 = smul.addr %s36, 128
      %s41 = scalar_lea.hbm %s1, %s40
      %s42 = sshll.u32 [#allocation5], 4
      %s43 = int_to_ptr.vmem [resolvable:$true] %s42
      %48 = dma.hbm_to_vmem [thread:$0]  %s41, 256, %s43, [#allocation6], 128, 128, 8
    $region9: #{tpu_custom_call.1} parent=1 // pred_fallthru
      _
    // Predicated region
    $region10: #{tpu_custom_call.1} parent=1 // pred_check
      _
    $region11: #{tpu_custom_call.1} parent=1 // pred_check_branch
      %50 = sbr.rel (0) target = $region13
    $region12: #{tpu_custom_call.1} parent=1 // pred_region
      %51 = dma.done [#allocation3], 256
    $region13: #{tpu_custom_call.1} parent=1 // pred_fallthru
      _
    // Predicated region
    $region14: #{tpu_custom_call.1} parent=1 // pred_check
      _
    $region15: #{tpu_custom_call.1} parent=1 // pred_check_branch
      %53 = sbr.rel (0) target = $region17
    $region16: #{tpu_custom_call.1} parent=1 // pred_region
      %54 = dma.done [#allocation6], 256
    $region17: #{tpu_custom_call.1} parent=1 // pred_fallthru
      _
    %s55 = sadd.s32 0, 0
    %p56 = scmp.lt.s32.totalorder %s55, 0
    %s57 = scalar_select %p56, %s55, 0
    %s58 = smul.u32 2, %s57
    %s59 = sadd.s32 0, 0
    %p60 = scmp.lt.s32.totalorder %s59, 0
    %s61 = scalar_select %p60, %s59, 0
    %s62 = smul.u32 2, %s61
    %p63 = scmp.eq.s32.totalorder 0, 0
    // Predicated region
    $region18: #{tpu_custom_call.1} parent=1 // pred_check
      %p64 = pneg %p63
    $region19: #{tpu_custom_call.1} parent=1 // pred_check_branch
      %66 = sbr.rel (%p64) target = $region21
    $region20: #{tpu_custom_call.1} parent=1 // pred_region
      %67 = vst [vmem:[#allocation7] sm:$0x1] 0
      %68 = vst [vmem:[#allocation8] sm:$0x1] 0
    $region21: #{tpu_custom_call.1} parent=1 // pred_fallthru
      _
    %v69 = vld [vmem:[#allocation2] sm:$0xff]
    %v70 = vld [vmem:[#allocation2 + $0x8] sm:$0xff]
    %v71 = vld [vmem:[#allocation5] sm:$0xff]
    %v72 = vld [vmem:[#allocation5 + $0x8] sm:$0xff]
    %vm73 = vcmp.ge.f32.partialorder %v69, 0.0
    %vm74 = vcmp.ge.f32.partialorder %v70, 0.0
    %vm75 = vcmp.ge.f32.partialorder %v71, 0.500001
    %vm76 = vcmp.ge.f32.partialorder %v72, 0.500001
    %vm77 = vmand %vm73, %vm75
    %vm78 = vmand %vm74, %vm76
    %vm79 = vmor %vm73, %vm75
    %vm80 = vmor %vm74, %vm76
    %s81 = sadd.s32 0, 0
    %s82 = smul.u32 %s81, 16
    %s83 = ssub.s32 16, %s82
    %p84 = scmp.ge.s32.totalorder %s83, 16
    // Predicated region
    $region22: #{tpu_custom_call.1} parent=1 // pred_check
      %p85 = pneg %p84
    $region23: #{tpu_custom_call.1} parent=1 // pred_check_branch
      %87 = sbr.rel (%p85) target = $region25
    $region24: #{tpu_custom_call.1} parent=1 // pred_region
      %v88 = vld [vmem:[#allocation7] sm:$0x1]
      %v89 = vsel %vm77, 1, 0
      %v90 = vsel %vm78, 1, 0
      %v91 = vadd.s32 %v89, %v90
      %v92 = vrot.slane %v91, 4
      %v93 = vadd.s32 %v91, %v92
      %v94 = vrot.slane %v93, 2
      %v95 = vadd.s32 %v93, %v94
      %v96 = vrot.slane %v95, 1
      %v97 = vadd.s32 %v95, %v96
      %v98 = vadd.s32 %v88, %v97
      %99 = vst [vmem:[#allocation7] sm:$0x1] %v98
      %v100 = vld [vmem:[#allocation8] sm:$0x1]
      %v101 = vsel %vm79, 1, 0
      %v102 = vsel %vm80, 1, 0
      %v103 = vadd.s32 %v101, %v102
      %v104 = vrot.slane %v103, 4
      %v105 = vadd.s32 %v103, %v104
      %v106 = vrot.slane %v105, 2
      %v107 = vadd.s32 %v105, %v106
      %v108 = vrot.slane %v107, 1
      %v109 = vadd.s32 %v107, %v108
      %v110 = vadd.s32 %v100, %v109
      %111 = vst [vmem:[#allocation8] sm:$0x1] %v110
    $region25: #{tpu_custom_call.1} parent=1 // pred_fallthru
      _
    %p112 = scmp.lt.s32.totalorder %s83, 16
    // Predicated region
    $region26: #{tpu_custom_call.1} parent=1 // pred_check
      %p113 = pneg %p112
    $region27: #{tpu_custom_call.1} parent=1 // pred_check_branch
      %115 = sbr.rel (%p113) target = $region29
    $region28: #{tpu_custom_call.1} parent=1 // pred_region
      %v116 = vlaneseq
      %v117 = vshrl.u32 %v116, 7
      %v118 = vadd.s32 %v117, 8
      %v119 = vstv %s83
      %vm120 = vcmp.lt.s32.totalorder %v117, %v119
      %vm121 = vcmp.lt.s32.totalorder %v118, %v119
      %v122 = vld [vmem:[#allocation7] sm:$0x1]
      %vm123 = vmand %vm77, %vm120
      %vm124 = vmand %vm78, %vm121
      %v125 = vsel %vm123, 1, 0
      %v126 = vsel %vm124, 1, 0
      %v127 = vadd.s32 %v125, %v126
      %v128 = vrot.slane %v127, 4
      %v129 = vadd.s32 %v127, %v128
      %v130 = vrot.slane %v129, 2
      %v131 = vadd.s32 %v129, %v130
      %v132 = vrot.slane %v131, 1
      %v133 = vadd.s32 %v131, %v132
      %v134 = vadd.s32 %v122, %v133
      %135 = vst [vmem:[#allocation7] sm:$0x1] %v134
      %v136 = vld [vmem:[#allocation8] sm:$0x1]
      %vm137 = vmand %vm79, %vm120
      %vm138 = vmand %vm80, %vm121
      %v139 = vsel %vm137, 1, 0
      %v140 = vsel %vm138, 1, 0
      %v141 = vadd.s32 %v139, %v140
      %v142 = vrot.slane %v141, 4
      %v143 = vadd.s32 %v141, %v142
      %v144 = vrot.slane %v143, 2
      %v145 = vadd.s32 %v143, %v144
      %v146 = vrot.slane %v145, 1
      %v147 = vadd.s32 %v145, %v146
      %v148 = vadd.s32 %v136, %v147
      %149 = vst [vmem:[#allocation8] sm:$0x1] %v148
    $region29: #{tpu_custom_call.1} parent=1 // pred_fallthru
      _
    // Predicated region
    $region30: #{tpu_custom_call.1} parent=1 // pred_check
      _
    $region31: #{tpu_custom_call.1} parent=1 // pred_check_branch
      %151 = sbr.rel (0) target = $region33
    $region32: #{tpu_custom_call.1} parent=1 // pred_region
      %s153 = ssub.s32 16, 16
      %154 = vsyncadd [#allocation4], %s153
      %s156 = sshll.u32 [#allocation7], 4
      %s157 = int_to_ptr.vmem [resolvable:$true] %s156
      %159 = dma.vmem_to_hbm [thread:$0]  %s157, 16, %s2, [#allocation4]
    $region33: #{tpu_custom_call.1} parent=1 // pred_fallthru
      _
    // Predicated region
    $region34: #{tpu_custom_call.1} parent=1 // pred_check
      _
    $region35: #{tpu_custom_call.1} parent=1 // pred_check_branch
      %161 = sbr.rel (0) target = $region37
    $region36: #{tpu_custom_call.1} parent=1 // pred_region
      %s163 = ssub.s32 16, 16
      %164 = vsyncadd [#allocation9], %s163
      %s166 = sshll.u32 [#allocation8], 4
      %s167 = int_to_ptr.vmem [resolvable:$true] %s166
      %169 = dma.vmem_to_hbm [thread:$0]  %s167, 16, %s3, [#allocation9]
    $region37: #{tpu_custom_call.1} parent=1 // pred_fallthru
      _
    // Predicated region
    $region38: #{tpu_custom_call.1} parent=1 // pred_check
      _
    $region39: #{tpu_custom_call.1} parent=1 // pred_check_branch
      %171 = sbr.rel (0) target = $region41
    $region40: #{tpu_custom_call.1} parent=1 // pred_region
      %172 = dma.done [#allocation4], 16
    $region41: #{tpu_custom_call.1} parent=1 // pred_fallthru
      _
    // Predicated region
    $region42: #{tpu_custom_call.1} parent=1 // pred_check
      _
    $region43: #{tpu_custom_call.1} parent=1 // pred_check_branch
      %174 = sbr.rel (0) target = $region45
    $region44: #{tpu_custom_call.1} parent=1 // pred_region
      %175 = dma.done [#allocation9], 16
    $region45: #{tpu_custom_call.1} parent=1 // pred_fallthru
      _
    %176 = vsyncpa [#allocation3], 1
    %177 = vsyncpa [#allocation6], 1
    %178 = vsyncpa [#allocation4], 1
    %179 = vsyncpa [#allocation9], 1

</llo_original>
